<compile_context>
chip_gen: v7x
topology: tpu7x:2x2x1
jax: 0.10.0
libtpu: 0.0.40
codegen_flags: <defaults>
</compile_context>

<pallas_src>
import functools
import math

import jax
import jax.numpy as jnp
from jax.experimental import pallas as pl
from jax.experimental.pallas import tpu as pltpu

LN_EPS = 1e-5  # torch.nn.LayerNorm default
_INV_SQRT2 = 1.0 / math.sqrt(2.0)


def _round_up(x, m):
    return (x + m - 1) // m * m


def _vmem_capacity_bytes():
    """Physical VMEM per core; conservative (v7x-sized) fallback if unknown."""
    try:
        return int(pltpu.get_tpu_info().vmem_capacity_bytes)
    except Exception:
        return 64 * 1024 * 1024


def _buffered_supported():
    """Does this JAX accept pipeline_mode=pl.Buffered(1) on BlockSpec?"""
    try:
        pl.BlockSpec((8, 128), lambda i: (0, 0), pipeline_mode=pl.Buffered(1))
        return True
    except Exception:
        return False


_HAS_BUFFERED = _buffered_supported()


def _weight_spec(block_shape, index_map):
    """Grid-invariant weight block: single-buffer it when supported (the block
    never changes, so double-buffering would only double VMEM)."""
    if _HAS_BUFFERED:
        return pl.BlockSpec(block_shape, index_map, pipeline_mode=pl.Buffered(1))
    return pl.BlockSpec(block_shape, index_map)


# ----------------------------- kernel helpers ------------------------------

def _layernorm_f32(x_ref, g_ref, b_ref):
    x = x_ref[...].astype(jnp.float32)
    mean = jnp.mean(x, axis=-1, keepdims=True)
    var = jnp.mean(jnp.square(x - mean), axis=-1, keepdims=True)
    xn = (x - mean) * jax.lax.rsqrt(var + LN_EPS)
    return xn * g_ref[...].astype(jnp.float32) + b_ref[...].astype(jnp.float32)


def _gelu_f32(h, approx_tanh):
    if approx_tanh:
        # tanh runs on the EUP (separate slot) -- use only if VALU binds and
        # tolerance allows; default stays the exact torch.nn.GELU form.
        c = math.sqrt(2.0 / math.pi)
        return 0.5 * h * (1.0 + jnp.tanh(c * (h + 0.044715 * h * h * h)))
    return 0.5 * h * (1.0 + jax.lax.erf(h * _INV_SQRT2))


# ------------------------- weight-resident kernel --------------------------

def ffn_kernel_resident(x_ref, g_ref, b_ref, w1_ref, b1_ref, w2_ref, b2_ref,
                        o_ref, *, approx_tanh):
    """Grid = (row_tiles,).  Full W1^T / W2^T resident in VMEM."""
    xn = _layernorm_f32(x_ref, g_ref, b_ref)
    # Linear(dim -> hidden): bf16 operands, f32 accumulation on the MXU.
    h = jnp.dot(xn.astype(w1_ref.dtype), w1_ref[...],
                preferred_element_type=jnp.float32)
    h = _gelu_f32(h + b1_ref[...].astype(jnp.float32), approx_tanh)
    # Linear(hidden -> dim)
    y = jnp.dot(h.astype(w2_ref.dtype), w2_ref[...],
                preferred_element_type=jnp.float32)
    o_ref[...] = (y + b2_ref[...].astype(jnp.float32)).astype(o_ref.dtype)


# -------------------------- hidden-tiled fallback ---------------------------

def ffn_kernel_tiled(x_ref, g_ref, b_ref, w1_ref, b1_ref, w2_ref, b2_ref,
                     o_ref, xn_ref, acc_ref, *, approx_tanh):
    """Grid = (row_tiles, hidden_tiles); hidden is the (arbitrary) reduction axis."""
    hj = pl.program_id(1)

    # hidden step 0: LayerNorm the row tile once, zero the accumulator.
    @pl.when(hj == 0)
    def _():
        xn = _layernorm_f32(x_ref, g_ref, b_ref)
        xn_ref[...] = xn.astype(xn_ref.dtype)      # cache bf16 for the MXU
        acc_ref[...] = jnp.zeros_like(acc_ref)

    h = jnp.dot(xn_ref[...], w1_ref[...], preferred_element_type=jnp.float32)
    h = _gelu_f32(h + b1_ref[...].astype(jnp.float32), approx_tanh)
    acc_ref[...] += jnp.dot(h.astype(w2_ref.dtype), w2_ref[...],
                            preferred_element_type=jnp.float32)

    @pl.when(hj == pl.num_programs(1) - 1)
    def _():
        y = acc_ref[...] + b2_ref[...].astype(jnp.float32)
        o_ref[...] = y.astype(o_ref.dtype)


# ----------------------------- VMEM estimates -------------------------------

def _resident_vmem_bytes(tm, dim, hidden, wbuf):
    io = 2 * (2 * tm * dim * 4)              # x + out row tiles, double-buffered f32
    w = wbuf * (2 * dim * hidden * 2)        # W1^T + W2^T bf16 (1 buf if Buffered(1))
    act = tm * hidden * (4 + 2)              # GELU intermediate f32 + bf16 copy
    act += tm * dim * (4 + 2)                # LN output f32 + bf16 copy
    small = 2 * 8 * (hidden + 3 * dim) * 4   # (1, D) param blocks pad to 8 sublanes
    return io + w + act + small


def _tiled_vmem_bytes(tm, dim, th):
    io = 2 * (2 * tm * dim * 4)
    w = 2 * (2 * dim * th * 2)               # double-buffered bf16 weight chunks
    act = tm * th * (4 + 2)
    scr = tm * dim * (2 + 4)                 # xn bf16 + acc f32 scratch
    small = 2 * 8 * (th + 3 * dim) * 4
    return io + w + act + scr + small


# --------------------------------- wrapper ----------------------------------

def prepare_ffn_params(params):
    """One-time kernel-ready param prep (hoisted out of the forward path):
    pre-transpose nn.Linear weights to (in, out), cast to bf16 (MXU-native),
    reshape LN params / biases to lane-major (1, D) rows in f32."""
    if params.get("_prepared", False):
        return params
    hidden, dim = params["w1"].shape
    return {
        "_prepared": True,
        "dim": dim,
        "hidden": hidden,
        "ln_g": params["ln_g"].reshape(1, dim).astype(jnp.float32),
        "ln_b": params["ln_b"].reshape(1, dim).astype(jnp.float32),
        "w1_t": params["w1"].T.astype(jnp.bfloat16),    # (dim, hidden)
        "b1": params["b1"].reshape(1, hidden).astype(jnp.float32),
        "w2_t": params["w2"].T.astype(jnp.bfloat16),    # (hidden, dim)
        "b2": params["b2"].reshape(1, dim).astype(jnp.float32),
    }


def feedforward_pallas(x, params, *, tm=512, th=1024, approx_tanh_gelu=False,
                       force_tiled=False):
    """x: (..., dim) float32.  params: raw PyTorch-layout dict or the output of
    prepare_ffn_params (preferred: prepare once, reuse every call)."""
    p = prepare_ffn_params(params)
    dim, hidden = p["dim"], p["hidden"]

    orig_shape = x.shape
    x2d = x.reshape(-1, dim)
    n = x2d.shape[0]

    # Row tiling: large tiles to keep the kernel MXU-bound; zero-pad N to a
    # multiple of tm (padded rows are finite through LN and sliced off).  With
    # n >= 2*tm the "parallel" row axis also shards across v7x's two TCs.
    tm = tm if n >= tm else _round_up(n, 8)
    n_pad = _round_up(n, tm)
    if n_pad != n:
        x2d = jnp.pad(x2d, ((0, n_pad - n), (0, 0)))

    cap = _vmem_capacity_bytes()
    vmem_limit = int(cap * 0.85)             # headroom for compiler scratch
    wbuf = 1 if _HAS_BUFFERED else 2

    use_resident = (not force_tiled) and (
        _resident_vmem_bytes(tm, dim, hidden, wbuf) <= vmem_limit)

    if use_resident:
        # ----- weight-resident path: weights DMA'd once, grid over rows only -----
        out2d = pl.pallas_call(
            functools.partial(ffn_kernel_resident, approx_tanh=approx_tanh_gelu),
            out_shape=jax.ShapeDtypeStruct((n_pad, dim), x.dtype),
            grid=(n_pad // tm,),
            in_specs=[
                pl.BlockSpec((tm, dim), lambda i: (i, 0)),      # x row tile
                pl.BlockSpec((1, dim), lambda i: (0, 0)),       # LN gamma
                pl.BlockSpec((1, dim), lambda i: (0, 0)),       # LN beta
                _weight_spec((dim, hidden), lambda i: (0, 0)),  # W1^T (resident)
                pl.BlockSpec((1, hidden), lambda i: (0, 0)),    # b1
                _weight_spec((hidden, dim), lambda i: (0, 0)),  # W2^T (resident)
                pl.BlockSpec((1, dim), lambda i: (0, 0)),       # b2
            ],
            out_specs=pl.BlockSpec((tm, dim), lambda i: (i, 0)),
            compiler_params=pltpu.CompilerParams(
                dimension_semantics=("parallel",),
                vmem_limit_bytes=vmem_limit,
            ),
        )(x2d, p["ln_g"], p["ln_b"], p["w1_t"], p["b1"], p["w2_t"], p["b2"])
    else:
        # ----- hidden-tiled fallback (hidden too large for VMEM residency) -----
        th = min(th, hidden)
        while _tiled_vmem_bytes(tm, dim, th) > vmem_limit and th > 256:
            th //= 2
        h_pad = _round_up(hidden, th)
        w1_t, w2_t, b1 = p["w1_t"], p["w2_t"], p["b1"]
        if h_pad != hidden:
            # Zero padding is exact: gelu(0)=0 and zero W2 rows contribute nothing.
            w1_t = jnp.pad(w1_t, ((0, 0), (0, h_pad - hidden)))
            w2_t = jnp.pad(w2_t, ((0, h_pad - hidden), (0, 0)))
            b1 = jnp.pad(b1, ((0, 0), (0, h_pad - hidden)))

        out2d = pl.pallas_call(
            functools.partial(ffn_kernel_tiled, approx_tanh=approx_tanh_gelu),
            out_shape=jax.ShapeDtypeStruct((n_pad, dim), x.dtype),
            grid=(n_pad // tm, h_pad // th),
            in_specs=[
                pl.BlockSpec((tm, dim), lambda i, j: (i, 0)),   # x row tile
                pl.BlockSpec((1, dim), lambda i, j: (0, 0)),    # LN gamma
                pl.BlockSpec((1, dim), lambda i, j: (0, 0)),    # LN beta
                pl.BlockSpec((dim, th), lambda i, j: (0, j)),   # W1^T hidden chunk
                pl.BlockSpec((1, th), lambda i, j: (0, j)),     # b1 hidden chunk
                pl.BlockSpec((th, dim), lambda i, j: (j, 0)),   # W2^T hidden chunk
                pl.BlockSpec((1, dim), lambda i, j: (0, 0)),    # b2
            ],
            out_specs=pl.BlockSpec((tm, dim), lambda i, j: (i, 0)),
            scratch_shapes=[
                pltpu.VMEM((tm, dim), jnp.bfloat16),   # cached LayerNorm output
                pltpu.VMEM((tm, dim), jnp.float32),    # f32 output accumulator
            ],
            compiler_params=pltpu.CompilerParams(
                dimension_semantics=("parallel", "arbitrary"),
                vmem_limit_bytes=vmem_limit,
            ),
        )(x2d, p["ln_g"], p["ln_b"], w1_t, b1, w2_t, p["b2"])

    if n_pad != n:
        out2d = out2d[:n]
    return out2d.reshape(orig_shape)


# ------------------------------ init / reference ----------------------------

def init_params(key, dim, hidden_dim):
    k1, k2, k3, k4 = jax.random.split(key, 4)
    bound1 = 1.0 / math.sqrt(dim)
    bound2 = 1.0 / math.sqrt(hidden_dim)
    return {
        "ln_g": jnp.ones((dim,), jnp.float32),
        "ln_b": jnp.zeros((dim,), jnp.float32),
        # nn.Linear default init: U(-1/sqrt(fan_in), 1/sqrt(fan_in))
        "w1": jax.random.uniform(k1, (hidden_dim, dim), jnp.float32, -bound1, bound1),
        "b1": jax.random.uniform(k2, (hidden_dim,), jnp.float32, -bound1, bound1),
        "w2": jax.random.uniform(k3, (dim, hidden_dim), jnp.float32, -bound2, bound2),
        "b2": jax.random.uniform(k4, (dim,), jnp.float32, -bound2, bound2),
    }


def feedforward_ref(x, params):
    """Pure-JAX f32 reference mirroring the PyTorch module."""
    mean = jnp.mean(x, axis=-1, keepdims=True)
    var = jnp.mean(jnp.square(x - mean), axis=-1, keepdims=True)
    xn = (x - mean) / jnp.sqrt(var + LN_EPS)
    xn = xn * params["ln_g"] + params["ln_b"]
    h = xn @ params["w1"].T + params["b1"]
    h = 0.5 * h * (1.0 + jax.lax.erf(h / math.sqrt(2.0)))
    return h @ params["w2"].T + params["b2"]


if __name__ == "__main__":
    batch, seq, dim, hidden_dim = 2, 8, 32, 64

    key = jax.random.PRNGKey(0)
    kx, kp = jax.random.split(key)
    x = jax.random.normal(kx, (batch, seq, dim), jnp.float32)
    params = init_params(kp, dim, hidden_dim)

    prepared = prepare_ffn_params(params)   # one-time weight transpose/cast (hoisted)

    out = feedforward_pallas(x, prepared)                       # weight-resident path
    out_tiled = feedforward_pallas(x, prepared, force_tiled=True)  # hidden-tiled fallback
    out, out_tiled = jax.block_until_ready((out, out_tiled))

    ref = feedforward_ref(x, params)
    assert out.shape == x.shape
    # bf16 MXU operands -> looser tolerance than a pure-f32 comparison.
    assert jnp.allclose(out, ref, atol=5e-2, rtol=5e-2), "resident path mismatch"
    assert jnp.allclose(out_tiled, ref, atol=5e-2, rtol=5e-2), "tiled path mismatch"

    print("KERNEL_OK")
</pallas_src>

<mosaic_0001>
module attributes {stable_mosaic.version = 11 : i64} {
  func.func @ffn_kernel_resident(%arg0: i32, %arg1: memref<16x32xf32, #tpu.memory_space<vmem>>, %arg2: memref<1x32xf32, #tpu.memory_space<vmem>>, %arg3: memref<1x32xf32, #tpu.memory_space<vmem>>, %arg4: memref<32x64xbf16, #tpu.memory_space<vmem>>, %arg5: memref<1x64xf32, #tpu.memory_space<vmem>>, %arg6: memref<64x32xbf16, #tpu.memory_space<vmem>>, %arg7: memref<1x32xf32, #tpu.memory_space<vmem>>, %arg8: memref<16x32xf32, #tpu.memory_space<vmem>>) attributes {dimension_semantics = [#tpu.dimension_semantics<parallel>], iteration_bounds = array<i64: 1>, scalar_prefetch = 0 : i64, scratch_operands = 0 : i64, tpu.core_type = #tpu.core_type<tc>, window_params = [{transform_indices = @transform_0, window_bounds = array<i64: 16, 32>}, {pipeline_mode = #tpu.pipeline_mode<synchronous>, transform_indices = @transform_1, window_bounds = array<i64: 1, 32>}, {pipeline_mode = #tpu.pipeline_mode<synchronous>, transform_indices = @transform_2, window_bounds = array<i64: 1, 32>}, {pipeline_mode = #tpu.pipeline_mode<synchronous>, transform_indices = @transform_3, window_bounds = array<i64: 32, 64>}, {pipeline_mode = #tpu.pipeline_mode<synchronous>, transform_indices = @transform_4, window_bounds = array<i64: 1, 64>}, {pipeline_mode = #tpu.pipeline_mode<synchronous>, transform_indices = @transform_5, window_bounds = array<i64: 64, 32>}, {pipeline_mode = #tpu.pipeline_mode<synchronous>, transform_indices = @transform_6, window_bounds = array<i64: 1, 32>}, {transform_indices = @transform_7, window_bounds = array<i64: 16, 32>}]} {
    %c0 = arith.constant 0 : index
    %c0_0 = arith.constant 0 : index
    %0 = vector.load %arg1[%c0, %c0_0] : memref<16x32xf32, #tpu.memory_space<vmem>>, vector<16x32xf32>
    %cst = arith.constant dense<0.000000e+00> : vector<16xf32>
    %1 = vector.multi_reduction <add>, %0, %cst [1] : vector<16x32xf32> to vector<16xf32>
    %2 = vector.shape_cast %1 : vector<16xf32> to vector<16x1xf32>
    %cst_1 = arith.constant 3.200000e+01 : f32
    %3 = vector.broadcast %cst_1 : f32 to vector<16x1xf32>
    %4 = arith.divf %2, %3 : vector<16x1xf32>
    %5 = vector.broadcast %4 : vector<16x1xf32> to vector<16x32xf32>
    %6 = arith.subf %0, %5 : vector<16x32xf32>
    %7 = arith.mulf %6, %6 : vector<16x32xf32>
    %cst_2 = arith.constant dense<0.000000e+00> : vector<16xf32>
    %8 = vector.multi_reduction <add>, %7, %cst_2 [1] : vector<16x32xf32> to vector<16xf32>
    %9 = vector.shape_cast %8 : vector<16xf32> to vector<16x1xf32>
    %cst_3 = arith.constant 3.200000e+01 : f32
    %10 = vector.broadcast %cst_3 : f32 to vector<16x1xf32>
    %11 = arith.divf %9, %10 : vector<16x1xf32>
    %12 = vector.broadcast %4 : vector<16x1xf32> to vector<16x32xf32>
    %13 = arith.subf %0, %12 : vector<16x32xf32>
    %cst_4 = arith.constant 9.99999974E-6 : f32
    %14 = vector.broadcast %cst_4 : f32 to vector<16x1xf32>
    %15 = arith.addf %11, %14 : vector<16x1xf32>
    %16 = math.rsqrt %15 : vector<16x1xf32>
    %17 = vector.broadcast %16 : vector<16x1xf32> to vector<16x32xf32>
    %18 = arith.mulf %13, %17 : vector<16x32xf32>
    %c0_5 = arith.constant 0 : index
    %c0_6 = arith.constant 0 : index
    %19 = vector.load %arg2[%c0_5, %c0_6] : memref<1x32xf32, #tpu.memory_space<vmem>>, vector<1x32xf32>
    %20 = vector.broadcast %19 : vector<1x32xf32> to vector<16x32xf32>
    %21 = arith.mulf %18, %20 : vector<16x32xf32>
    %c0_7 = arith.constant 0 : index
    %c0_8 = arith.constant 0 : index
    %22 = vector.load %arg3[%c0_7, %c0_8] : memref<1x32xf32, #tpu.memory_space<vmem>>, vector<1x32xf32>
    %23 = vector.broadcast %22 : vector<1x32xf32> to vector<16x32xf32>
    %24 = arith.addf %21, %23 : vector<16x32xf32>
    %25 = arith.truncf %24 : vector<16x32xf32> to vector<16x32xbf16>
    %c0_9 = arith.constant 0 : index
    %c0_10 = arith.constant 0 : index
    %26 = vector.load %arg4[%c0_9, %c0_10] : memref<32x64xbf16, #tpu.memory_space<vmem>>, vector<32x64xbf16>
    %cst_11 = arith.constant dense<0.000000e+00> : vector<16x64xf32>
    %27 = tpu.matmul %25, %26, %cst_11 {dimension_numbers = #tpu.dot_dimension_numbers<[1], [0], [0], [1], [0, 0, 1, 1], [], []>} : vector<16x32xbf16>, vector<32x64xbf16>, vector<16x64xf32> -> vector<16x64xf32>
    %c0_12 = arith.constant 0 : index
    %c0_13 = arith.constant 0 : index
    %28 = vector.load %arg5[%c0_12, %c0_13] : memref<1x64xf32, #tpu.memory_space<vmem>>, vector<1x64xf32>
    %29 = vector.broadcast %28 : vector<1x64xf32> to vector<16x64xf32>
    %30 = arith.addf %27, %29 : vector<16x64xf32>
    %cst_14 = arith.constant 5.000000e-01 : f32
    %31 = vector.broadcast %cst_14 : f32 to vector<16x64xf32>
    %32 = arith.mulf %31, %30 : vector<16x64xf32>
    %cst_15 = arith.constant 0.707106769 : f32
    %33 = vector.broadcast %cst_15 : f32 to vector<16x64xf32>
    %34 = arith.mulf %30, %33 : vector<16x64xf32>
    %35 = math.erf %34 : vector<16x64xf32>
    %cst_16 = arith.constant 1.000000e+00 : f32
    %36 = vector.broadcast %cst_16 : f32 to vector<16x64xf32>
    %37 = arith.addf %36, %35 : vector<16x64xf32>
    %38 = arith.mulf %32, %37 : vector<16x64xf32>
    %39 = arith.truncf %38 : vector<16x64xf32> to vector<16x64xbf16>
    %c0_17 = arith.constant 0 : index
    %c0_18 = arith.constant 0 : index
    %40 = vector.load %arg6[%c0_17, %c0_18] : memref<64x32xbf16, #tpu.memory_space<vmem>>, vector<64x32xbf16>
    %cst_19 = arith.constant dense<0.000000e+00> : vector<16x32xf32>
    %41 = tpu.matmul %39, %40, %cst_19 {dimension_numbers = #tpu.dot_dimension_numbers<[1], [0], [0], [1], [0, 0, 1, 1], [], []>} : vector<16x64xbf16>, vector<64x32xbf16>, vector<16x32xf32> -> vector<16x32xf32>
    %c0_20 = arith.constant 0 : index
    %c0_21 = arith.constant 0 : index
    %42 = vector.load %arg7[%c0_20, %c0_21] : memref<1x32xf32, #tpu.memory_space<vmem>>, vector<1x32xf32>
    %43 = vector.broadcast %42 : vector<1x32xf32> to vector<16x32xf32>
    %44 = arith.addf %41, %43 : vector<16x32xf32>
    %c0_22 = arith.constant 0 : index
    %c0_23 = arith.constant 0 : index
    %45 = vector.load %arg8[%c0_22, %c0_23] : memref<16x32xf32, #tpu.memory_space<vmem>>, vector<16x32xf32>
    tpu.vector_store %arg8[%c0_22, %c0_23], %44 {strides = array<i32>} : memref<16x32xf32, #tpu.memory_space<vmem>>, vector<16x32xf32>,
    return
  }
  func.func @transform_0(%arg0: i32) -> (i32, i32) {
    %c0_i32 = arith.constant 0 : i32
    %c0_i32_0 = arith.constant 0 : i32
    return %arg0, %c0_i32 : i32, i32
  }
  func.func @transform_1(%arg0: i32) -> (i32, i32) {
    %c0_i32 = arith.constant 0 : i32
    %c0_i32_0 = arith.constant 0 : i32
    %c0_i32_1 = arith.constant 0 : i32
    return %c0_i32, %c0_i32_0 : i32, i32
  }
  func.func @transform_2(%arg0: i32) -> (i32, i32) {
    %c0_i32 = arith.constant 0 : i32
    %c0_i32_0 = arith.constant 0 : i32
    %c0_i32_1 = arith.constant 0 : i32
    return %c0_i32, %c0_i32_0 : i32, i32
  }
  func.func @transform_3(%arg0: i32) -> (i32, i32) {
    %c0_i32 = arith.constant 0 : i32
    %c0_i32_0 = arith.constant 0 : i32
    %c0_i32_1 = arith.constant 0 : i32
    return %c0_i32, %c0_i32_0 : i32, i32
  }
  func.func @transform_4(%arg0: i32) -> (i32, i32) {
    %c0_i32 = arith.constant 0 : i32
    %c0_i32_0 = arith.constant 0 : i32
    %c0_i32_1 = arith.constant 0 : i32
    return %c0_i32, %c0_i32_0 : i32, i32
  }
  func.func @transform_5(%arg0: i32) -> (i32, i32) {
    %c0_i32 = arith.constant 0 : i32
    %c0_i32_0 = arith.constant 0 : i32
    %c0_i32_1 = arith.constant 0 : i32
    return %c0_i32, %c0_i32_0 : i32, i32
  }
  func.func @transform_6(%arg0: i32) -> (i32, i32) {
    %c0_i32 = arith.constant 0 : i32
    %c0_i32_0 = arith.constant 0 : i32
    %c0_i32_1 = arith.constant 0 : i32
    return %c0_i32, %c0_i32_0 : i32, i32
  }
  func.func @transform_7(%arg0: i32) -> (i32, i32) {
    %c0_i32 = arith.constant 0 : i32
    %c0_i32_0 = arith.constant 0 : i32
    return %arg0, %c0_i32 : i32, i32
  }
}

</mosaic_0001>

<llo_original>
// kernel: tpu_custom_call.1
$region0: #{tpu_custom_call.1}
  #allocation0 [shape = 'u32[]', space=smem, size = 0x4, offset = 0x4, fixed_abs, tag = 'smem constant byte address 0x4 - core index']
  #allocation1 [shape = 'u32[144,128]{1,0:T(1,128)}', space=vmem, size = 0x12000, scoped, tag = 'internal scratch']
  %s0 = inlined_call_operand.vmem [shape: f32[16,32], index: 0, kind: input, shape index: {}]
  %s1 = inlined_call_operand.vmem [shape: f32[1,32], index: 1, kind: input, shape index: {}]
  %s2 = inlined_call_operand.vmem [shape: f32[1,32], index: 2, kind: input, shape index: {}]
  %s3 = inlined_call_operand.vmem [shape: bf16[32,64], index: 3, kind: input, shape index: {}]
  %s4 = inlined_call_operand.vmem [shape: f32[1,64], index: 4, kind: input, shape index: {}]
  %s5 = inlined_call_operand.vmem [shape: bf16[64,32], index: 5, kind: input, shape index: {}]
  %s6 = inlined_call_operand.vmem [shape: f32[1,32], index: 6, kind: input, shape index: {}]
  %s7 = inlined_call_operand.hbm [shape: f32[16,32], index: 7, kind: output, shape index: {}]
  %s8 = sld [smem:[#allocation0]]
  $region38: #{tpu_custom_call.1} parent=0
    _
  %s10 = ssub.s32 1, %s8
  %s11 = scalar_select 0, %s10, %s8
  $region1: #{tpu_custom_call.1} parent=0
    #allocation2 [shape = 'u8[8192]{0}', space=vmem, size = 0x2000, scoped, tag = 'output window, operand 0, single buffered']
    #allocation3 [shape = 's32[1]{0}', space=sflag, size = 0x4, scoped, tag = 'scoped memory for tpu_custom_call.1']
    %12 = vsyncpa [#allocation3], 0
    // Predicated region
    $region2: #{tpu_custom_call.1} parent=1 // pred_check
      _
    $region3: #{tpu_custom_call.1} parent=1 // pred_check_branch
      %14 = sbr.rel (0) target = $region5
    $region4: #{tpu_custom_call.1} parent=1 // pred_region
      _
    $region5: #{tpu_custom_call.1} parent=1 // pred_fallthru
      _
    // Predicated region
    $region6: #{tpu_custom_call.1} parent=1 // pred_check
      _
    $region7: #{tpu_custom_call.1} parent=1 // pred_check_branch
      %16 = sbr.rel (0) target = $region9
    $region8: #{tpu_custom_call.1} parent=1 // pred_region
      _
    $region9: #{tpu_custom_call.1} parent=1 // pred_fallthru
      _
    // Predicated region
    $region10: #{tpu_custom_call.1} parent=1 // pred_check
      _
    $region11: #{tpu_custom_call.1} parent=1 // pred_check_branch
      %18 = sbr.rel (0) target = $region13
    $region12: #{tpu_custom_call.1} parent=1 // pred_region
      _
    $region13: #{tpu_custom_call.1} parent=1 // pred_fallthru
      _
    // Predicated region
    $region14: #{tpu_custom_call.1} parent=1 // pred_check
      _
    $region15: #{tpu_custom_call.1} parent=1 // pred_check_branch
      %20 = sbr.rel (0) target = $region17
    $region16: #{tpu_custom_call.1} parent=1 // pred_region
      _
    $region17: #{tpu_custom_call.1} parent=1 // pred_fallthru
      _
    // Predicated region
    $region18: #{tpu_custom_call.1} parent=1 // pred_check
      _
    $region19: #{tpu_custom_call.1} parent=1 // pred_check_branch
      %22 = sbr.rel (0) target = $region21
    $region20: #{tpu_custom_call.1} parent=1 // pred_region
      _
    $region21: #{tpu_custom_call.1} parent=1 // pred_fallthru
      _
    // Predicated region
    $region22: #{tpu_custom_call.1} parent=1 // pred_check
      _
    $region23: #{tpu_custom_call.1} parent=1 // pred_check_branch
      %24 = sbr.rel (0) target = $region25
    $region24: #{tpu_custom_call.1} parent=1 // pred_region
      _
    $region25: #{tpu_custom_call.1} parent=1 // pred_fallthru
      _
    // Predicated region
    $region26: #{tpu_custom_call.1} parent=1 // pred_check
      _
    $region27: #{tpu_custom_call.1} parent=1 // pred_check_branch
      %26 = sbr.rel (0) target = $region29
    $region28: #{tpu_custom_call.1} parent=1 // pred_region
      _
    $region29: #{tpu_custom_call.1} parent=1 // pred_fallthru
      _
    %v28 = vld [vmem:[%s0] sm:$0xff]
    %v29 = vld [vmem:[%s0 + $0x8] sm:$0xff]
    %vm30 = vcmask 261120
    %v31 = vsel %vm30, %v28, 0.0
    %32 = vadd.xlane.f32.xlu0 %v31
    %v33 = vpop.xlane.xlu0 %32
    %v34 = vsel %vm30, %v29, 0.0
    %35 = vadd.xlane.f32.xlu0 %v34
    %v36 = vpop.xlane.xlu0 %35
    %v37 = vrcp.pop 32.0
    %v38 = vmul.f32 %v33, %v37
    %v39 = vmul.f32 %v36, %v37
    %v40 = vsub.f32 %v28, %v38
    %v41 = vsub.f32 %v29, %v39
    %v42 = vmul.f32 %v40, %v40
    %v43 = vmul.f32 %v41, %v41
    %v44 = vsel %vm30, %v42, 0.0
    %45 = vadd.xlane.f32.xlu0 %v44
    %v46 = vpop.xlane.xlu0 %45
    %v47 = vsel %vm30, %v43, 0.0
    %48 = vadd.xlane.f32.xlu0 %v47
    %v49 = vpop.xlane.xlu0 %48
    %v50 = vmul.f32 %v46, %v37
    %v51 = vmul.f32 %v49, %v37
    %v52 = vadd.f32 %v50, 1e-05
    %v53 = vadd.f32 %v51, 1e-05
    %v54 = vrsqrt.pop %v52
    %v55 = vrsqrt.pop %v53
    %v56 = vmul.f32 %v40, %v54
    %v57 = vmul.f32 %v41, %v55
    %v58 = vld [vmem:[%s1] sm:$0x1]
    %v60 = vlaneseq
    %v61 = vshrl.u32 %v60, 7
    %v62 = vsub.s32 0, %v61
    %v63 = vrot.slane %v58, %v62
    %v65 = vmul.f32 %v56, %v63
    %v66 = vmul.f32 %v57, %v63
    %v67 = vld [vmem:[%s2] sm:$0x1]
    %v69 = vlaneseq
    %v70 = vshrl.u32 %v69, 7
    %v71 = vsub.s32 0, %v70
    %v72 = vrot.slane %v67, %v71
    %v74 = vadd.f32 %v65, %v72
    %v75 = vadd.f32 %v66, %v72
    %v76 = vpack.c.bf16 %v75, %v74
    %v77 = vld [vmem:[%s3] sm:$0xf]
    %v78 = vld [vmem:[%s3 + $0x4] sm:$0xf]
    %v79 = vld [vmem:[%s3 + $0x8] sm:$0xf]
    %v80 = vld [vmem:[%s3 + $0xc] sm:$0xf]
    %v81 = vld [vmem:[%s4] sm:$0x1]
    %v83 = vlaneseq
    %v84 = vshrl.u32 %v83, 7
    %v85 = vsub.s32 0, %v84
    %v86 = vrot.slane %v81, %v85
    %v92 = vunpack.c.l.b16 %v77
    %v93 = vunpack.c.l.b16 %v78
    %v94 = vunpack.c.l.b16 %v79
    %v95 = vunpack.c.l.b16 %v80
    %v96 = vpack.c.b16 %v93, %v92
    %v97 = vpack.c.b16 %v95, %v94
    %v101 = vsel %vm30, %v76, 0
    %103 = vmatprep.subr.bf16.mxu0 0
    %104 = vmatpush1.bf16.msra.mxu0 %v96
    %105 = vmatprep.subr.bf16.mxu0 0
    %106 = vmatpush1.bf16.msra.mxu0 %v97
    %107 = vmatprep.subr.bf16.mxu0 0
    %108 = vmatpush1.bf16.msra.mxu0 0
    %109 = vmatprep.subr.bf16.mxu0 0
    %110 = vmatpush1.bf16.msra.mxu0 0
    %111 = vmatprep.subr.bf16.mxu0 0
    %112 = vmatpush1.bf16.msra.mxu0 0
    %113 = vmatprep.subr.bf16.mxu0 0
    %114 = vmatpush1.bf16.msra.mxu0 0
    %115 = vmatprep.subr.bf16.mxu0 0
    %116 = vmatpush1.bf16.msra.mxu0 0
    %117 = vmatprep.subr.bf16.mxu0 0
    %118 = vmatpush1.bf16.msra.mxu0 0
    %119 = vmatprep.subr.bf16.mxu0 0
    %120 = vmatpush1.bf16.msra.mxu0 0
    %121 = vmatprep.subr.bf16.mxu0 0
    %122 = vmatpush1.bf16.msra.mxu0 0
    %123 = vmatprep.subr.bf16.mxu0 0
    %124 = vmatpush1.bf16.msra.mxu0 0
    %125 = vmatprep.subr.bf16.mxu0 0
    %126 = vmatpush1.bf16.msra.mxu0 0
    %127 = vmatprep.subr.bf16.mxu0 0
    %128 = vmatpush1.bf16.msra.mxu0 0
    %129 = vmatprep.subr.bf16.mxu0 0
    %130 = vmatpush1.bf16.msra.mxu0 0
    %131 = vmatprep.subr.bf16.mxu0 0
    %132 = vmatpush1.bf16.msra.mxu0 0
    %133 = vmatprep.subr.bf16.mxu0 0
    %134 = vmatpush1.bf16.msra.mxu0 0
    %135 = vmatprep.mubr.bf16.mxu0 0
    %136 = vmatmul.mubr.bf16.gmra.mrb[0].mxu0 %v101
    %v137 = vpop.f32.mrb[0].mxu0
    %v138 = vadd.f32 %v86, %v137
    %v139 = vpop.f32.mrb[0].mxu0
    %v140 = vpop.f32.mrb[0].mxu0
    %v141 = vadd.f32 %v86, %v140
    %v142 = vpop.f32.mrb[0].mxu0
    %143 = vdwg.mxu0
    %v144 = vmul.f32 %v138, 0.5
    %v145 = vmul.f32 %v141, 0.5
    %v146 = vmul.f32 %v138, 0.70710677
    %v147 = vmul.f32 %v141, 0.70710677
    %v148 = verf.f32.pop %v146
    %v149 = verf.f32.pop %v147
    %v150 = vadd.f32 %v148, 1.0
    %v151 = vadd.f32 %v149, 1.0
    %v152 = vmul.f32 %v144, %v150
    %v153 = vmul.f32 %v145, %v151
    %v154 = vpack.c.bf16 %v153, %v152
    %v155 = vld [vmem:[%s5] sm:$0xf]
    %v156 = vld [vmem:[%s5 + $0x4] sm:$0xf]
    %v157 = vld [vmem:[%s5 + $0x8] sm:$0xf]
    %v158 = vld [vmem:[%s5 + $0xc] sm:$0xf]
    %v159 = vld [vmem:[%s5 + $0x10] sm:$0xf]
    %v160 = vld [vmem:[%s5 + $0x14] sm:$0xf]
    %v161 = vld [vmem:[%s5 + $0x18] sm:$0xf]
    %v162 = vld [vmem:[%s5 + $0x1c] sm:$0xf]
    %v163 = vld [vmem:[%s6] sm:$0x1]
    %v165 = vlaneseq
    %v166 = vshrl.u32 %v165, 7
    %v167 = vsub.s32 0, %v166
    %v168 = vrot.slane %v163, %v167
    %v178 = vunpack.c.l.b16 %v155
    %v179 = vunpack.c.l.b16 %v156
    %v180 = vunpack.c.l.b16 %v157
    %v181 = vunpack.c.l.b16 %v158
    %v182 = vunpack.c.l.b16 %v159
    %v183 = vunpack.c.l.b16 %v160
    %v184 = vunpack.c.l.b16 %v161
    %v185 = vunpack.c.l.b16 %v162
    %v186 = vpack.c.b16 %v179, %v178
    %v187 = vpack.c.b16 %v181, %v180
    %v188 = vpack.c.b16 %v183, %v182
    %v189 = vpack.c.b16 %v185, %v184
    %vm194 = vcmask 523264
    %v196 = vsel %vm194, %v154, 0
    %198 = vmatprep.subr.bf16.mxu0 0
    %199 = vmatpush1.bf16.msra.mxu0 %v186
    %200 = vmatprep.subr.bf16.mxu0 0
    %201 = vmatpush1.bf16.msra.mxu0 %v187
    %202 = vmatprep.subr.bf16.mxu0 0
    %203 = vmatpush1.bf16.msra.mxu0 %v188
    %204 = vmatprep.subr.bf16.mxu0 0
    %205 = vmatpush1.bf16.msra.mxu0 %v189
    %206 = vmatprep.subr.bf16.mxu0 0
    %207 = vmatpush1.bf16.msra.mxu0 0
    %208 = vmatprep.subr.bf16.mxu0 0
    %209 = vmatpush1.bf16.msra.mxu0 0
    %210 = vmatprep.subr.bf16.mxu0 0
    %211 = vmatpush1.bf16.msra.mxu0 0
    %212 = vmatprep.subr.bf16.mxu0 0
    %213 = vmatpush1.bf16.msra.mxu0 0
    %214 = vmatprep.subr.bf16.mxu0 0
    %215 = vmatpush1.bf16.msra.mxu0 0
    %216 = vmatprep.subr.bf16.mxu0 0
    %217 = vmatpush1.bf16.msra.mxu0 0
    %218 = vmatprep.subr.bf16.mxu0 0
    %219 = vmatpush1.bf16.msra.mxu0 0
    %220 = vmatprep.subr.bf16.mxu0 0
    %221 = vmatpush1.bf16.msra.mxu0 0
    %222 = vmatprep.subr.bf16.mxu0 0
    %223 = vmatpush1.bf16.msra.mxu0 0
    %224 = vmatprep.subr.bf16.mxu0 0
    %225 = vmatpush1.bf16.msra.mxu0 0
    %226 = vmatprep.subr.bf16.mxu0 0
    %227 = vmatpush1.bf16.msra.mxu0 0
    %228 = vmatprep.subr.bf16.mxu0 0
    %229 = vmatpush1.bf16.msra.mxu0 0
    %230 = vmatprep.mubr.bf16.mxu0 0
    %231 = vmatmul.mubr.bf16.gmra.mrb[0].mxu0 %v196
    %v232 = vpop.f32.mrb[0].mxu0
    %v233 = vadd.f32 %v168, %v232
    %v234 = vpop.f32.mrb[0].mxu0
    %v235 = vpop.f32.mrb[0].mxu0
    %v236 = vadd.f32 %v168, %v235
    %v237 = vpop.f32.mrb[0].mxu0
    %238 = vdwg.mxu0
    %239 = vst.msk [vmem:[#allocation2] sm:$0xff] %vm30, %v233
    %240 = vst.msk [vmem:[#allocation2 + $0x8] sm:$0xff] %vm30, %v236
    // Predicated region
    $region30: #{tpu_custom_call.1} parent=1 // pred_check
      _
    $region31: #{tpu_custom_call.1} parent=1 // pred_check_branch
      %242 = sbr.rel (0) target = $region33
    $region32: #{tpu_custom_call.1} parent=1 // pred_region
      %s244 = ssub.s32 256, 256
      %245 = vsyncadd [#allocation3], %s244
      %s246 = sshll.u32 [#allocation2], 4
      %s247 = int_to_ptr.vmem [resolvable:$true] %s246
      %252 = dma.vmem_to_hbm [thread:$0]  %s247, 256, %s7, [#allocation3], 128, 128, 8
    $region33: #{tpu_custom_call.1} parent=1 // pred_fallthru
      _
    // Predicated region
    $region34: #{tpu_custom_call.1} parent=1 // pred_check
      _
    $region35: #{tpu_custom_call.1} parent=1 // pred_check_branch
      %254 = sbr.rel (0) target = $region37
    $region36: #{tpu_custom_call.1} parent=1 // pred_region
      %255 = dma.done [#allocation3], 256
    $region37: #{tpu_custom_call.1} parent=1 // pred_fallthru
      _
    %256 = vsyncpa [#allocation3], 1

</llo_original>
